<compile_context>
chip_gen: v7x
topology: tpu7x:2x2x1
jax: 0.10.0
libtpu: 0.0.40
codegen_flags: <defaults>
</compile_context>

<pallas_src>
import jax
import jax.numpy as jnp
from jax import lax
from jax.experimental import pallas as pl
from jax.experimental.pallas import tpu as pltpu


def _mlp_kernel(x_ref, w1_ref, b1_ref, w2_ref, b2_ref, w3_ref, b3_ref,
                w4_ref, b4_ref, o_ref):
    x = x_ref[...]                                    # (tile, D), batch on sublanes
    # Layer 1: contract over D -> (16, tile); batch moves onto the lane dim.
    h = lax.dot_general(w1_ref[...], x, (((1,), (1,)), ((), ())),
                        preferred_element_type=jnp.float32)
    h = jnp.maximum(h + b1_ref[...], 0.0)             # (16, tile)
    # Layer 2: (8,16) @ (16,tile) -> (8, tile)
    h = jnp.dot(w2_ref[...], h, preferred_element_type=jnp.float32) + b2_ref[...]
    h = jnp.maximum(h, 0.0)
    # Layer 3: (8,8) @ (8,tile) -> (8, tile)
    h = jnp.dot(w3_ref[...], h, preferred_element_type=jnp.float32) + b3_ref[...]
    h = jnp.maximum(h, 0.0)
    # Dropout(p=0.1): identity in eval/inference mode.
    # TODO(synk): training-mode dropout (pltpu.prng_seed/prng_random_bits mask
    #             + 1/(1-p) scale) not implemented.
    # Layer 4 (1x8) on the VPU/XLU: broadcast-mul + sublane reduction, then sigmoid.
    w4_col = w4_ref[...].reshape(w4_ref.shape[1], 1)  # (1,8) -> (8,1)
    out = jnp.sum(h * w4_col, axis=0, keepdims=True) + b4_ref[...]   # (1, tile)
    o_ref[...] = jax.nn.sigmoid(out)


def _pick_tile(batch, d, vmem_x_budget_bytes, max_tile=None):
    """Largest 128-multiple batch tile whose double-buffered x block fits the budget."""
    lane_d = 128 * pl.cdiv(d, 128)              # VMEM lane-padded width of an x row
    bytes_per_row = lane_d * 4                  # f32
    cap = vmem_x_budget_bytes // (2 * bytes_per_row)   # 2x for double buffering
    cap = max(128, (cap // 128) * 128)
    if max_tile is not None:
        cap = min(cap, max(128, (int(max_tile) // 128) * 128))
    b_lanes = 128 * pl.cdiv(batch, 128)
    tile = min(cap, b_lanes)
    # v7x megacore: keep >=2 grid steps whenever the batch spans >=2 lane groups
    # so ("parallel",) can shard tiles across both TensorCores.
    if b_lanes >= 256:
        half = 128 * pl.cdiv(b_lanes, 256)      # ~ceil(b_lanes/2), 128-aligned
        tile = min(tile, half)
    return tile


def ann_forward(x, params, *, vmem_x_budget_bytes=16 * 1024 * 1024, max_tile=None):
    """Fused ANN forward.  x: (B, input_size) f32.  Returns (B, 1) f32."""
    w1, b1, w2, b2, w3, b3, w4, b4 = params
    B, D = x.shape

    tile = _pick_tile(B, D, vmem_x_budget_bytes, max_tile)
    num_tiles = pl.cdiv(B, tile)

    def full_spec(shape):
        # Tiny parameter tensors: one full block, constant index map -> VMEM-resident.
        return pl.BlockSpec(shape, lambda i: tuple(0 for _ in shape))

    out = pl.pallas_call(
        _mlp_kernel,
        out_shape=jax.ShapeDtypeStruct((1, B), jnp.float32),
        grid_spec=pltpu.PrefetchScalarGridSpec(
            num_scalar_prefetch=0,
            grid=(num_tiles,),
            in_specs=[
                pl.BlockSpec((tile, D), lambda i: (i, 0)),   # x: natural layout, no pre-pass
                full_spec(w1.shape), full_spec(b1.shape),
                full_spec(w2.shape), full_spec(b2.shape),
                full_spec(w3.shape), full_spec(b3.shape),
                full_spec(w4.shape), full_spec(b4.shape),
            ],
            out_specs=pl.BlockSpec((1, tile), lambda i: (0, i)),
        ),
        compiler_params=pltpu.CompilerParams(
            dimension_semantics=("parallel",),      # shard batch tiles across TCs on v7x
            vmem_limit_bytes=48 * 1024 * 1024,      # x dbl-buf (<=16 MiB) + scratch; <=48 MiB keeps v7x (64 MiB) safe
        ),
    )(x, w1, b1, w2, b2, w3, b3, w4, b4)

    return out[0, :].reshape(B, 1)


def init_params(key, input_size):
    """PyTorch-style init: W (out, in), b (out, 1), U(-1/sqrt(fan_in), 1/sqrt(fan_in))."""
    sizes = [(input_size, 16), (16, 8), (8, 8), (8, 1)]
    params = []
    for fan_in, fan_out in sizes:
        key, kw, kb = jax.random.split(key, 3)
        bound = 1.0 / (fan_in ** 0.5)
        w = jax.random.uniform(kw, (fan_out, fan_in), jnp.float32, -bound, bound)
        b = jax.random.uniform(kb, (fan_out, 1), jnp.float32, -bound, bound)
        params.extend([w, b])
    return tuple(params)


def ann_reference(x, params):
    """Pure-JAX reference for correctness checking (eval-mode dropout = identity)."""
    w1, b1, w2, b2, w3, b3, w4, b4 = params
    h = jnp.maximum(x @ w1.T + b1.T, 0.0)
    h = jnp.maximum(h @ w2.T + b2.T, 0.0)
    h = jnp.maximum(h @ w3.T + b3.T, 0.0)
    return jax.nn.sigmoid(h @ w4.T + b4.T)


if __name__ == "__main__":
    key = jax.random.PRNGKey(0)
    key, kx = jax.random.split(key)

    input_size = 32
    batch = 300  # not a multiple of 128: exercises edge-block masking + a 2-step grid
    x = jax.random.normal(kx, (batch, input_size), jnp.float32)
    params = init_params(key, input_size)

    out = ann_forward(x, params)
    out = jax.block_until_ready(out)

    ref = ann_reference(x, params)
    assert out.shape == (batch, 1), out.shape
    assert jnp.allclose(out, ref, atol=1e-5, rtol=1e-5), float(jnp.abs(out - ref).max())

    print("KERNEL_OK")
</pallas_src>

<mosaic_0001>
module attributes {stable_mosaic.version = 11 : i64} {
  func.func @_mlp_kernel(%arg0: i32, %arg1: memref<256x32xf32, #tpu.memory_space<vmem>>, %arg2: memref<16x32xf32, #tpu.memory_space<vmem>>, %arg3: memref<16x1xf32, #tpu.memory_space<vmem>>, %arg4: memref<8x16xf32, #tpu.memory_space<vmem>>, %arg5: memref<8x1xf32, #tpu.memory_space<vmem>>, %arg6: memref<8x8xf32, #tpu.memory_space<vmem>>, %arg7: memref<8x1xf32, #tpu.memory_space<vmem>>, %arg8: memref<1x8xf32, #tpu.memory_space<vmem>>, %arg9: memref<1x1xf32, #tpu.memory_space<vmem>>, %arg10: memref<1x256xf32, #tpu.memory_space<vmem>>) attributes {dimension_semantics = [#tpu.dimension_semantics<parallel>], iteration_bounds = array<i64: 2>, scalar_prefetch = 0 : i64, scratch_operands = 0 : i64, tpu.core_type = #tpu.core_type<tc>, window_params = [{transform_indices = @transform_0, window_bounds = array<i64: 256, 32>}, {pipeline_mode = #tpu.pipeline_mode<synchronous>, transform_indices = @transform_1, window_bounds = array<i64: 16, 32>}, {pipeline_mode = #tpu.pipeline_mode<synchronous>, transform_indices = @transform_2, window_bounds = array<i64: 16, 1>}, {pipeline_mode = #tpu.pipeline_mode<synchronous>, transform_indices = @transform_3, window_bounds = array<i64: 8, 16>}, {pipeline_mode = #tpu.pipeline_mode<synchronous>, transform_indices = @transform_4, window_bounds = array<i64: 8, 1>}, {pipeline_mode = #tpu.pipeline_mode<synchronous>, transform_indices = @transform_5, window_bounds = array<i64: 8, 8>}, {pipeline_mode = #tpu.pipeline_mode<synchronous>, transform_indices = @transform_6, window_bounds = array<i64: 8, 1>}, {pipeline_mode = #tpu.pipeline_mode<synchronous>, transform_indices = @transform_7, window_bounds = array<i64: 1, 8>}, {pipeline_mode = #tpu.pipeline_mode<synchronous>, transform_indices = @transform_8, window_bounds = array<i64: 1, 1>}, {transform_indices = @transform_9, window_bounds = array<i64: 1, 256>}]} {
    %c0 = arith.constant 0 : index
    %c0_0 = arith.constant 0 : index
    %0 = vector.load %arg1[%c0, %c0_0] : memref<256x32xf32, #tpu.memory_space<vmem>>, vector<256x32xf32>
    %c0_1 = arith.constant 0 : index
    %c0_2 = arith.constant 0 : index
    %1 = vector.load %arg2[%c0_1, %c0_2] : memref<16x32xf32, #tpu.memory_space<vmem>>, vector<16x32xf32>
    %cst = arith.constant dense<0.000000e+00> : vector<16x256xf32>
    %2 = tpu.matmul %1, %0, %cst {dimension_numbers = #tpu.dot_dimension_numbers<[1], [1], [0], [0], [0, 0, 1, 0], [], []>} : vector<16x32xf32>, vector<256x32xf32>, vector<16x256xf32> -> vector<16x256xf32>
    %c0_3 = arith.constant 0 : index
    %c0_4 = arith.constant 0 : index
    %3 = vector.load %arg3[%c0_3, %c0_4] : memref<16x1xf32, #tpu.memory_space<vmem>>, vector<16x1xf32>
    %4 = vector.broadcast %3 : vector<16x1xf32> to vector<16x256xf32>
    %5 = arith.addf %2, %4 : vector<16x256xf32>
    %cst_5 = arith.constant 0.000000e+00 : f32
    %6 = vector.broadcast %cst_5 : f32 to vector<16x256xf32>
    %7 = arith.maximumf %5, %6 : vector<16x256xf32>
    %c0_6 = arith.constant 0 : index
    %c0_7 = arith.constant 0 : index
    %8 = vector.load %arg4[%c0_6, %c0_7] : memref<8x16xf32, #tpu.memory_space<vmem>>, vector<8x16xf32>
    %cst_8 = arith.constant dense<0.000000e+00> : vector<8x256xf32>
    %9 = tpu.matmul %8, %7, %cst_8 {dimension_numbers = #tpu.dot_dimension_numbers<[1], [0], [0], [1], [0, 0, 1, 1], [], []>} : vector<8x16xf32>, vector<16x256xf32>, vector<8x256xf32> -> vector<8x256xf32>
    %c0_9 = arith.constant 0 : index
    %c0_10 = arith.constant 0 : index
    %10 = vector.load %arg5[%c0_9, %c0_10] : memref<8x1xf32, #tpu.memory_space<vmem>>, vector<8x1xf32>
    %11 = vector.broadcast %10 : vector<8x1xf32> to vector<8x256xf32>
    %12 = arith.addf %9, %11 : vector<8x256xf32>
    %cst_11 = arith.constant 0.000000e+00 : f32
    %13 = vector.broadcast %cst_11 : f32 to vector<8x256xf32>
    %14 = arith.maximumf %12, %13 : vector<8x256xf32>
    %c0_12 = arith.constant 0 : index
    %c0_13 = arith.constant 0 : index
    %15 = vector.load %arg6[%c0_12, %c0_13] : memref<8x8xf32, #tpu.memory_space<vmem>>, vector<8x8xf32>
    %cst_14 = arith.constant dense<0.000000e+00> : vector<8x256xf32>
    %16 = tpu.matmul %15, %14, %cst_14 {dimension_numbers = #tpu.dot_dimension_numbers<[1], [0], [0], [1], [0, 0, 1, 1], [], []>} : vector<8x8xf32>, vector<8x256xf32>, vector<8x256xf32> -> vector<8x256xf32>
    %c0_15 = arith.constant 0 : index
    %c0_16 = arith.constant 0 : index
    %17 = vector.load %arg7[%c0_15, %c0_16] : memref<8x1xf32, #tpu.memory_space<vmem>>, vector<8x1xf32>
    %18 = vector.broadcast %17 : vector<8x1xf32> to vector<8x256xf32>
    %19 = arith.addf %16, %18 : vector<8x256xf32>
    %cst_17 = arith.constant 0.000000e+00 : f32
    %20 = vector.broadcast %cst_17 : f32 to vector<8x256xf32>
    %21 = arith.maximumf %19, %20 : vector<8x256xf32>
    %c0_18 = arith.constant 0 : index
    %c0_19 = arith.constant 0 : index
    %22 = vector.load %arg8[%c0_18, %c0_19] : memref<1x8xf32, #tpu.memory_space<vmem>>, vector<1x8xf32>
    %23 = vector.shape_cast %22 : vector<1x8xf32> to vector<8x1xf32>
    %24 = vector.broadcast %23 : vector<8x1xf32> to vector<8x256xf32>
    %25 = arith.mulf %21, %24 : vector<8x256xf32>
    %cst_20 = arith.constant dense<0.000000e+00> : vector<256xf32>
    %26 = vector.multi_reduction <add>, %25, %cst_20 [0] : vector<8x256xf32> to vector<256xf32>
    %27 = vector.shape_cast %26 : vector<256xf32> to vector<1x256xf32>
    %c0_21 = arith.constant 0 : index
    %c0_22 = arith.constant 0 : index
    %28 = vector.load %arg9[%c0_21, %c0_22] : memref<1x1xf32, #tpu.memory_space<vmem>>, vector<1x1xf32>
    %29 = vector.broadcast %28 : vector<1x1xf32> to vector<1x256xf32>
    %30 = arith.addf %27, %29 : vector<1x256xf32>
    %31 = arith.negf %30 : vector<1x256xf32>
    %32 = math.exp %31 : vector<1x256xf32>
    %cst_23 = arith.constant 1.000000e+00 : f32
    %33 = vector.broadcast %cst_23 : f32 to vector<1x256xf32>
    %34 = arith.addf %33, %32 : vector<1x256xf32>
    %35 = arith.divf %33, %34 : vector<1x256xf32>
    %c0_24 = arith.constant 0 : index
    %c0_25 = arith.constant 0 : index
    %36 = vector.load %arg10[%c0_24, %c0_25] : memref<1x256xf32, #tpu.memory_space<vmem>>, vector<1x256xf32>
    tpu.vector_store %arg10[%c0_24, %c0_25], %35 {strides = array<i32>} : memref<1x256xf32, #tpu.memory_space<vmem>>, vector<1x256xf32>,
    return
  }
  func.func @transform_0(%arg0: i32) -> (i32, i32) {
    %c0_i32 = arith.constant 0 : i32
    %c0_i32_0 = arith.constant 0 : i32
    return %arg0, %c0_i32 : i32, i32
  }
  func.func @transform_1(%arg0: i32) -> (i32, i32) {
    %c0_i32 = arith.constant 0 : i32
    %c0_i32_0 = arith.constant 0 : i32
    %c0_i32_1 = arith.constant 0 : i32
    return %c0_i32, %c0_i32_0 : i32, i32
  }
  func.func @transform_2(%arg0: i32) -> (i32, i32) {
    %c0_i32 = arith.constant 0 : i32
    %c0_i32_0 = arith.constant 0 : i32
    %c0_i32_1 = arith.constant 0 : i32
    return %c0_i32, %c0_i32_0 : i32, i32
  }
  func.func @transform_3(%arg0: i32) -> (i32, i32) {
    %c0_i32 = arith.constant 0 : i32
    %c0_i32_0 = arith.constant 0 : i32
    %c0_i32_1 = arith.constant 0 : i32
    return %c0_i32, %c0_i32_0 : i32, i32
  }
  func.func @transform_4(%arg0: i32) -> (i32, i32) {
    %c0_i32 = arith.constant 0 : i32
    %c0_i32_0 = arith.constant 0 : i32
    %c0_i32_1 = arith.constant 0 : i32
    return %c0_i32, %c0_i32_0 : i32, i32
  }
  func.func @transform_5(%arg0: i32) -> (i32, i32) {
    %c0_i32 = arith.constant 0 : i32
    %c0_i32_0 = arith.constant 0 : i32
    %c0_i32_1 = arith.constant 0 : i32
    return %c0_i32, %c0_i32_0 : i32, i32
  }
  func.func @transform_6(%arg0: i32) -> (i32, i32) {
    %c0_i32 = arith.constant 0 : i32
    %c0_i32_0 = arith.constant 0 : i32
    %c0_i32_1 = arith.constant 0 : i32
    return %c0_i32, %c0_i32_0 : i32, i32
  }
  func.func @transform_7(%arg0: i32) -> (i32, i32) {
    %c0_i32 = arith.constant 0 : i32
    %c0_i32_0 = arith.constant 0 : i32
    %c0_i32_1 = arith.constant 0 : i32
    return %c0_i32, %c0_i32_0 : i32, i32
  }
  func.func @transform_8(%arg0: i32) -> (i32, i32) {
    %c0_i32 = arith.constant 0 : i32
    %c0_i32_0 = arith.constant 0 : i32
    %c0_i32_1 = arith.constant 0 : i32
    return %c0_i32, %c0_i32_0 : i32, i32
  }
  func.func @transform_9(%arg0: i32) -> (i32, i32) {
    %c0_i32 = arith.constant 0 : i32
    %c0_i32_0 = arith.constant 0 : i32
    return %c0_i32, %arg0 : i32, i32
  }
}

</mosaic_0001>

<llo_original>
// kernel: tpu_custom_call.1
$region0: #{tpu_custom_call.1}
  #allocation0 [shape = 'u32[]', space=smem, size = 0x4, offset = 0x4, fixed_abs, tag = 'smem constant byte address 0x4 - core index']
  #allocation1 [shape = 'u32[144,128]{1,0:T(1,128)}', space=vmem, size = 0x12000, scoped, tag = 'internal scratch']
  #allocation2 [shape = 'f32[1,1]{1,0:T(1,128)S(1)}', space=vmem, size = 0x200, scoped, tag = 'scoped memory for tpu_custom_call.1']
  %s0 = inlined_call_operand.vmem [shape: f32[300,32], index: 0, kind: input, shape index: {}]
  %s1 = inlined_call_operand.vmem [shape: f32[16,32], index: 1, kind: input, shape index: {}]
  %s2 = inlined_call_operand.vmem [shape: f32[16,1], index: 2, kind: input, shape index: {}]
  %s3 = inlined_call_operand.vmem [shape: f32[8,16], index: 3, kind: input, shape index: {}]
  %s4 = inlined_call_operand.vmem [shape: f32[8,1], index: 4, kind: input, shape index: {}]
  %s5 = inlined_call_operand.vmem [shape: f32[8,8], index: 5, kind: input, shape index: {}]
  %s6 = inlined_call_operand.vmem [shape: f32[8,1], index: 6, kind: input, shape index: {}]
  %s7 = inlined_call_operand.vmem [shape: f32[1,8], index: 7, kind: input, shape index: {}]
  %s8 = inlined_call_operand.<no memory space> [shape: f32[1,1], index: 8, kind: input, shape index: {}]
  %s9 = inlined_call_operand.hbm [shape: f32[1,300], index: 9, kind: output, shape index: {}]
  %s10 = sld [smem:[#allocation0]]
  $region69: #{tpu_custom_call.1} parent=0
    _
  %s12 = ssub.s32 1, %s10
  %s13 = scalar_select 0, %s12, %s10
  %v14 = vstv %s8
  %15 = vst [vmem:[#allocation2] sm:$0x1] %v14
  $region1: #{tpu_custom_call.1} parent=0
    #allocation3 [shape = 'u8[2048]{0}', space=vmem, size = 0x800, scoped, tag = 'output window, operand 0']
    #allocation4 [shape = 's32[2]{0}', space=sflag, size = 0x8, scoped, tag = 'scoped memory for tpu_custom_call.1']
    %16 = vsyncpa [#allocation4], 0
    %s17 = scalar_lea.sflag [#allocation4], 1
    %18 = vsyncpa %s17, 0
    loop: start=0, step=1, limit=4
    $region2: #{tpu_custom_call.1} parent=1 // loop_pre_header
      _
    $region3: #{tpu_custom_call.1} parent=1 // loop_header
      %s20 = sphi 0, %s24
      %p21 = scmp.ge.s32.totalorder %s20, 4
      %s30 = sphi 0, %s32
      %s33 = sphi 0, %s30
      %s34 = sphi 0, %s33
      %s50 = sphi 0, %s34
      %s54 = sphi 0, %s54
      %s56 = sphi 0, %s54
      %s57 = sphi 0, %s56
      %s71 = sphi 0, %s57
      %s75 = sphi 0, %s75
      %s77 = sphi 0, %s75
      %s78 = sphi 0, %s77
      %s92 = sphi 0, %s78
      %s96 = sphi 0, %s96
      %s98 = sphi 0, %s96
      %s99 = sphi 0, %s98
      %s113 = sphi 0, %s99
      %s117 = sphi 0, %s117
      %s119 = sphi 0, %s117
      %s120 = sphi 0, %s119
      %s134 = sphi 0, %s120
      %s138 = sphi 0, %s138
      %s140 = sphi 0, %s138
      %s141 = sphi 0, %s140
      %s155 = sphi 0, %s141
      %s159 = sphi 0, %s159
      %s161 = sphi 0, %s159
      %s162 = sphi 0, %s161
      %s176 = sphi 0, %s162
      %s180 = sphi 0, %s180
      %s182 = sphi 0, %s180
      %s183 = sphi 0, %s182
      %s197 = sphi 0, %s183
      %s201 = sphi 0, %s201
      %s203 = sphi 0, %s201
      %s204 = sphi 0, %s203
      %s218 = sphi 0, %s204
      %s224 = sphi 0, %s226
      %s227 = sphi 0, %s224
      %s228 = sphi 0, %s227
      %s244 = sphi 0, %s228
    $region4: #{tpu_custom_call.1} parent=1 // loop_header_branch
      %23 = sbr.rel (%p21) target = $region8
    $region5: #{tpu_custom_call.1} parent=1 // loop_body
      %s25 = ssub.s32 %s20, 1
      %s26 = ssub.s32 %s20, 2
      %s27 = sadd.s32 %s20, 1
      %s28 = ssub.s32 %s20, %s27
      %p29 = scmp.eq.s32.totalorder %s28, 0
      %s31 = sadd.s32 %s30, 1
      %s32 = scalar_select %p29, %s30, %s31
      %p35 = pneg %p29
      %p36 = scmp.eq.s32.totalorder %s20, 1
      %p37 = por %p35, %p36
      %p38 = scmp.ne.s32.totalorder %s30, %s33
      %p39 = scmp.eq.s32.totalorder %s20, 0
      %p40 = por %p38, %p39
      %p41 = scmp.ne.s32.totalorder %s30, %s33
      %p42 = scmp.eq.s32.totalorder %s25, 1
      %p43 = por %p41, %p42
      %p44 = scmp.ne.s32.totalorder %s33, %s34
      %p45 = scmp.eq.s32.totalorder %s25, 0
      %p46 = por %p44, %p45
      %p47 = scmp.ne.s32.totalorder %s33, %s34
      %p48 = scmp.eq.s32.totalorder %s26, 1
      %p49 = por %p47, %p48
      %p51 = scmp.ne.s32.totalorder %s34, %s50
      %p52 = scmp.eq.s32.totalorder %s26, 0
      %p53 = por %p51, %p52
      %s55 = sadd.s32 %s54, 1
      %p58 = scmp.eq.s32.totalorder %s20, 1
      %p59 = scmp.ne.s32.totalorder %s54, %s56
      %p60 = scmp.eq.s32.totalorder %s20, 0
      %p61 = por %p59, %p60
      %p62 = scmp.ne.s32.totalorder %s54, %s56
      %p63 = scmp.eq.s32.totalorder %s25, 1
      %p64 = por %p62, %p63
      %p65 = scmp.ne.s32.totalorder %s56, %s57
      %p66 = scmp.eq.s32.totalorder %s25, 0
      %p67 = por %p65, %p66
      %p68 = scmp.ne.s32.totalorder %s56, %s57
      %p69 = scmp.eq.s32.totalorder %s26, 1
      %p70 = por %p68, %p69
      %p72 = scmp.ne.s32.totalorder %s57, %s71
      %p73 = scmp.eq.s32.totalorder %s26, 0
      %p74 = por %p72, %p73
      %s76 = sadd.s32 %s75, 1
      %p79 = scmp.eq.s32.totalorder %s20, 1
      %p80 = scmp.ne.s32.totalorder %s75, %s77
      %p81 = scmp.eq.s32.totalorder %s20, 0
      %p82 = por %p80, %p81
      %p83 = scmp.ne.s32.totalorder %s75, %s77
      %p84 = scmp.eq.s32.totalorder %s25, 1
      %p85 = por %p83, %p84
      %p86 = scmp.ne.s32.totalorder %s77, %s78
      %p87 = scmp.eq.s32.totalorder %s25, 0
      %p88 = por %p86, %p87
      %p89 = scmp.ne.s32.totalorder %s77, %s78
      %p90 = scmp.eq.s32.totalorder %s26, 1
      %p91 = por %p89, %p90
      %p93 = scmp.ne.s32.totalorder %s78, %s92
      %p94 = scmp.eq.s32.totalorder %s26, 0
      %p95 = por %p93, %p94
      %s97 = sadd.s32 %s96, 1
      %p100 = scmp.eq.s32.totalorder %s20, 1
      %p101 = scmp.ne.s32.totalorder %s96, %s98
      %p102 = scmp.eq.s32.totalorder %s20, 0
      %p103 = por %p101, %p102
      %p104 = scmp.ne.s32.totalorder %s96, %s98
      %p105 = scmp.eq.s32.totalorder %s25, 1
      %p106 = por %p104, %p105
      %p107 = scmp.ne.s32.totalorder %s98, %s99
      %p108 = scmp.eq.s32.totalorder %s25, 0
      %p109 = por %p107, %p108
      %p110 = scmp.ne.s32.totalorder %s98, %s99
      %p111 = scmp.eq.s32.totalorder %s26, 1
      %p112 = por %p110, %p111
      %p114 = scmp.ne.s32.totalorder %s99, %s113
      %p115 = scmp.eq.s32.totalorder %s26, 0
      %p116 = por %p114, %p115
      %s118 = sadd.s32 %s117, 1
      %p121 = scmp.eq.s32.totalorder %s20, 1
      %p122 = scmp.ne.s32.totalorder %s117, %s119
      %p123 = scmp.eq.s32.totalorder %s20, 0
      %p124 = por %p122, %p123
      %p125 = scmp.ne.s32.totalorder %s117, %s119
      %p126 = scmp.eq.s32.totalorder %s25, 1
      %p127 = por %p125, %p126
      %p128 = scmp.ne.s32.totalorder %s119, %s120
      %p129 = scmp.eq.s32.totalorder %s25, 0
      %p130 = por %p128, %p129
      %p131 = scmp.ne.s32.totalorder %s119, %s120
      %p132 = scmp.eq.s32.totalorder %s26, 1
      %p133 = por %p131, %p132
      %p135 = scmp.ne.s32.totalorder %s120, %s134
      %p136 = scmp.eq.s32.totalorder %s26, 0
      %p137 = por %p135, %p136
      %s139 = sadd.s32 %s138, 1
      %p142 = scmp.eq.s32.totalorder %s20, 1
      %p143 = scmp.ne.s32.totalorder %s138, %s140
      %p144 = scmp.eq.s32.totalorder %s20, 0
      %p145 = por %p143, %p144
      %p146 = scmp.ne.s32.totalorder %s138, %s140
      %p147 = scmp.eq.s32.totalorder %s25, 1
      %p148 = por %p146, %p147
      %p149 = scmp.ne.s32.totalorder %s140, %s141
      %p150 = scmp.eq.s32.totalorder %s25, 0
      %p151 = por %p149, %p150
      %p152 = scmp.ne.s32.totalorder %s140, %s141
      %p153 = scmp.eq.s32.totalorder %s26, 1
      %p154 = por %p152, %p153
      %p156 = scmp.ne.s32.totalorder %s141, %s155
      %p157 = scmp.eq.s32.totalorder %s26, 0
      %p158 = por %p156, %p157
      %s160 = sadd.s32 %s159, 1
      %p163 = scmp.eq.s32.totalorder %s20, 1
      %p164 = scmp.ne.s32.totalorder %s159, %s161
      %p165 = scmp.eq.s32.totalorder %s20, 0
      %p166 = por %p164, %p165
      %p167 = scmp.ne.s32.totalorder %s159, %s161
      %p168 = scmp.eq.s32.totalorder %s25, 1
      %p169 = por %p167, %p168
      %p170 = scmp.ne.s32.totalorder %s161, %s162
      %p171 = scmp.eq.s32.totalorder %s25, 0
      %p172 = por %p170, %p171
      %p173 = scmp.ne.s32.totalorder %s161, %s162
      %p174 = scmp.eq.s32.totalorder %s26, 1
      %p175 = por %p173, %p174
      %p177 = scmp.ne.s32.totalorder %s162, %s176
      %p178 = scmp.eq.s32.totalorder %s26, 0
      %p179 = por %p177, %p178
      %s181 = sadd.s32 %s180, 1
      %p184 = scmp.eq.s32.totalorder %s20, 1
      %p185 = scmp.ne.s32.totalorder %s180, %s182
      %p186 = scmp.eq.s32.totalorder %s20, 0
      %p187 = por %p185, %p186
      %p188 = scmp.ne.s32.totalorder %s180, %s182
      %p189 = scmp.eq.s32.totalorder %s25, 1
      %p190 = por %p188, %p189
      %p191 = scmp.ne.s32.totalorder %s182, %s183
      %p192 = scmp.eq.s32.totalorder %s25, 0
      %p193 = por %p191, %p192
      %p194 = scmp.ne.s32.totalorder %s182, %s183
      %p195 = scmp.eq.s32.totalorder %s26, 1
      %p196 = por %p194, %p195
      %p198 = scmp.ne.s32.totalorder %s183, %s197
      %p199 = scmp.eq.s32.totalorder %s26, 0
      %p200 = por %p198, %p199
      %s202 = sadd.s32 %s201, 1
      %p205 = scmp.eq.s32.totalorder %s20, 1
      %p206 = scmp.ne.s32.totalorder %s201, %s203
      %p207 = scmp.eq.s32.totalorder %s20, 0
      %p208 = por %p206, %p207
      %p209 = scmp.ne.s32.totalorder %s201, %s203
      %p210 = scmp.eq.s32.totalorder %s25, 1
      %p211 = por %p209, %p210
      %p212 = scmp.ne.s32.totalorder %s203, %s204
      %p213 = scmp.eq.s32.totalorder %s25, 0
      %p214 = por %p212, %p213
      %p215 = scmp.ne.s32.totalorder %s203, %s204
      %p216 = scmp.eq.s32.totalorder %s26, 1
      %p217 = por %p215, %p216
      %p219 = scmp.ne.s32.totalorder %s204, %s218
      %p220 = scmp.eq.s32.totalorder %s26, 0
      %p221 = por %p219, %p220
      %s222 = ssub.s32 %s20, %s27
      %p223 = scmp.eq.s32.totalorder %s222, 0
      %s225 = sadd.s32 %s224, 1
      %s226 = scalar_select %p223, %s224, %s225
      %p229 = pneg %p223
      %p230 = scmp.eq.s32.totalorder %s20, 1
      %p231 = por %p229, %p230
      %p232 = scmp.ne.s32.totalorder %s224, %s227
      %p233 = scmp.eq.s32.totalorder %s20, 0
      %p234 = por %p232, %p233
      %p235 = scmp.ne.s32.totalorder %s224, %s227
      %p236 = scmp.eq.s32.totalorder %s25, 1
      %p237 = por %p235, %p236
      %p238 = scmp.ne.s32.totalorder %s227, %s228
      %p239 = scmp.eq.s32.totalorder %s25, 0
      %p240 = por %p238, %p239
      %p241 = scmp.ne.s32.totalorder %s227, %s228
      %p242 = scmp.eq.s32.totalorder %s26, 1
      %p243 = por %p241, %p242
      %p245 = scmp.ne.s32.totalorder %s228, %s244
      %p246 = scmp.eq.s32.totalorder %s26, 0
      %p247 = por %p245, %p246
      %p248 = scmp.le.s32.totalorder 1, %s20
      %p249 = scmp.lt.s32.totalorder %s20, 3
      %p250 = pnand %p248, %p249
      %p251 = pneg %p250
      // Predicated region
      $region9: #{tpu_custom_call.1} parent=5 // pred_check
        _
      $region10: #{tpu_custom_call.1} parent=5 // pred_check_branch
        %253 = sbr.rel (%p250) target = $region12
      $region11: #{tpu_custom_call.1} parent=5 // pred_region
        %s254 = ssub.s32 %s20, 1
        // Predicated region
        $region13: #{tpu_custom_call.1} parent=11 // pred_check
          %p255 = pneg %p67
        $region14: #{tpu_custom_call.1} parent=11 // pred_check_branch
          %257 = sbr.rel (%p255) target = $region16
        $region15: #{tpu_custom_call.1} parent=11 // pred_region
          _
        $region16: #{tpu_custom_call.1} parent=11 // pred_fallthru
          _
        // Predicated region
        $region17: #{tpu_custom_call.1} parent=11 // pred_check
          %p258 = pneg %p88
        $region18: #{tpu_custom_call.1} parent=11 // pred_check_branch
          %260 = sbr.rel (%p258) target = $region20
        $region19: #{tpu_custom_call.1} parent=11 // pred_region
          _
        $region20: #{tpu_custom_call.1} parent=11 // pred_fallthru
          _
        // Predicated region
        $region21: #{tpu_custom_call.1} parent=11 // pred_check
          %p261 = pneg %p109
        $region22: #{tpu_custom_call.1} parent=11 // pred_check_branch
          %263 = sbr.rel (%p261) target = $region24
        $region23: #{tpu_custom_call.1} parent=11 // pred_region
          _
        $region24: #{tpu_custom_call.1} parent=11 // pred_fallthru
          _
        // Predicated region
        $region25: #{tpu_custom_call.1} parent=11 // pred_check
          %p264 = pneg %p130
        $region26: #{tpu_custom_call.1} parent=11 // pred_check_branch
          %266 = sbr.rel (%p264) target = $region28
        $region27: #{tpu_custom_call.1} parent=11 // pred_region
          _
        $region28: #{tpu_custom_call.1} parent=11 // pred_fallthru
          _
        // Predicated region
        $region29: #{tpu_custom_call.1} parent=11 // pred_check
          %p267 = pneg %p151
        $region30: #{tpu_custom_call.1} parent=11 // pred_check_branch
          %269 = sbr.rel (%p267) target = $region32
        $region31: #{tpu_custom_call.1} parent=11 // pred_region
          _
        $region32: #{tpu_custom_call.1} parent=11 // pred_fallthru
          _
        // Predicated region
        $region33: #{tpu_custom_call.1} parent=11 // pred_check
          %p270 = pneg %p172
        $region34: #{tpu_custom_call.1} parent=11 // pred_check_branch
          %272 = sbr.rel (%p270) target = $region36
        $region35: #{tpu_custom_call.1} parent=11 // pred_region
          _
        $region36: #{tpu_custom_call.1} parent=11 // pred_fallthru
          _
        // Predicated region
        $region37: #{tpu_custom_call.1} parent=11 // pred_check
          %p273 = pneg %p193
        $region38: #{tpu_custom_call.1} parent=11 // pred_check_branch
          %275 = sbr.rel (%p273) target = $region40
        $region39: #{tpu_custom_call.1} parent=11 // pred_region
          _
        $region40: #{tpu_custom_call.1} parent=11 // pred_fallthru
          _
        // Predicated region
        $region41: #{tpu_custom_call.1} parent=11 // pred_check
          %p276 = pneg %p214
        $region42: #{tpu_custom_call.1} parent=11 // pred_check_branch
          %278 = sbr.rel (%p276) target = $region44
        $region43: #{tpu_custom_call.1} parent=11 // pred_region
          _
        $region44: #{tpu_custom_call.1} parent=11 // pred_fallthru
          _
      $region12: #{tpu_custom_call.1} parent=5 // pred_fallthru
        _
      %p279 = scmp.lt.s32.totalorder %s20, 2
      // Predicated region
      $region45: #{tpu_custom_call.1} parent=5 // pred_check
        %p280 = pneg %p279
      $region46: #{tpu_custom_call.1} parent=5 // pred_check_branch
        %282 = sbr.rel (%p280) target = $region48
      $region47: #{tpu_custom_call.1} parent=5 // pred_region
        // Predicated region
        $region49: #{tpu_custom_call.1} parent=47 // pred_check
          %p283 = pneg %p40
        $region50: #{tpu_custom_call.1} parent=47 // pred_check_branch
          %285 = sbr.rel (%p283) target = $region52
        $region51: #{tpu_custom_call.1} parent=47 // pred_region
          %s286 = smul.u32 32, %s20
          %s287 = ssub.s32 38, %s286
          %p288 = scmp.lt.s32.totalorder %s287, 32
          %s289 = scalar_select %p288, %s287, 32
          %s290 = smul.u32 128, %s289
          %p291 = scmp.lt.s32.totalorder %s286, 37
          %s292 = scalar_select %p291, %s286, 37
          %s293 = smul.addr %s292, 8
          %s294 = scalar_lea.vmem %s0, %s293
          %s295 = smul.u32 32, %s20
          %s296 = ssub.s32 38, %s295
          %p297 = scmp.lt.s32.totalorder %s296, 32
          %s298 = scalar_select %p297, %s296, 32
          %s299 = smul.u32 128, %s298
        $region52: #{tpu_custom_call.1} parent=47 // pred_fallthru
          _
      $region48: #{tpu_custom_call.1} parent=5 // pred_fallthru
        _
      %p300 = scmp.le.s32.totalorder 1, %s20
      %p301 = scmp.lt.s32.totalorder %s20, 3
      %p302 = pnand %p300, %p301
      %p303 = pneg %p302
      // Predicated region
      $region53: #{tpu_custom_call.1} parent=5 // pred_check
        _
      $region54: #{tpu_custom_call.1} parent=5 // pred_check_branch
        %305 = sbr.rel (%p302) target = $region56
      $region55: #{tpu_custom_call.1} parent=5 // pred_region
        %s306 = ssub.s32 %s20, 1
        %s307 = smul.u32 32, %s25
        %s308 = ssub.s32 38, %s307
        %p309 = scmp.lt.s32.totalorder %s308, 32
        %s310 = scalar_select %p309, %s308, 32
        %s311 = smul.u32 128, %s310
        %p312 = scmp.lt.s32.totalorder %s307, 37
        %s313 = scalar_select %p312, %s307, 37
        %s314 = smul.addr %s313, 8
        %s315 = scalar_lea.vmem %s0, %s314
        %p316 = pneg %p46
        %p317 = pneg %p43
        %p318 = pneg %p67
        %p319 = pneg %p64
        %p320 = pneg %p88
        %p321 = pneg %p85
        %p322 = pneg %p109
        %p323 = pneg %p106
        %p324 = pneg %p130
        %p325 = pneg %p127
        %p326 = pneg %p151
        %p327 = pneg %p148
        %p328 = pneg %p172
        %p329 = pneg %p169
        %p330 = pneg %p193
        %p331 = pneg %p190
        %p332 = pneg %p214
        %p333 = pneg %p211
        %p334 = pneg %p240
        %p335 = pneg %p237
        %s336 = sand.u32 %s227, 1
        %s337 = scalar_lea.sflag [#allocation4], %s336
        %s338 = sand.u32 %s227, 1
        %s339 = smul.addr %s338, 2
        %s340 = scalar_lea.vmem [#allocation3], %s339
        %s341 = smul.u32 32, %s25
        %s342 = ssub.s32 38, %s341
        %p343 = scmp.lt.s32.totalorder %s342, 32
        %s344 = scalar_select %p343, %s342, 32
        %s345 = smul.u32 128, %s344
        %p346 = scmp.lt.s32.totalorder %s341, 37
        %s347 = scalar_select %p346, %s341, 37
        %s348 = smul.addr %s347, 8
        %s349 = scalar_lea.vmem %s0, %s348
        %s350 = smul.u32 32, %s25
        %s351 = ssub.s32 38, %s350
        %p352 = scmp.lt.s32.totalorder %s351, 32
        %s353 = scalar_select %p352, %s351, 32
        %s354 = smul.u32 128, %s353
        %s355 = smul.u32 2, %s25
        %s356 = ssub.s32 3, %s355
        %p357 = scmp.lt.s32.totalorder %s356, 2
        %s358 = scalar_select %p357, %s356, 2
        %s359 = smul.u32 16, %s358
        %v360 = vld [vmem:[%s349] sm:$0xff]
        %v361 = vld [vmem:[%s349 + $0x8] sm:$0xff]
        %v362 = vld [vmem:[%s349 + $0x10] sm:$0xff]
        %v363 = vld [vmem:[%s349 + $0x18] sm:$0xff]
        %v364 = vld [vmem:[%s349 + $0x20] sm:$0xff]
        %v365 = vld [vmem:[%s349 + $0x28] sm:$0xff]
        %v366 = vld [vmem:[%s349 + $0x30] sm:$0xff]
        %v367 = vld [vmem:[%s349 + $0x38] sm:$0xff]
        %v368 = vld [vmem:[%s349 + $0x40] sm:$0xff]
        %v369 = vld [vmem:[%s349 + $0x48] sm:$0xff]
        %v370 = vld [vmem:[%s349 + $0x50] sm:$0xff]
        %v371 = vld [vmem:[%s349 + $0x58] sm:$0xff]
        %v372 = vld [vmem:[%s349 + $0x60] sm:$0xff]
        %v373 = vld [vmem:[%s349 + $0x68] sm:$0xff]
        %v374 = vld [vmem:[%s349 + $0x70] sm:$0xff]
        %v375 = vld [vmem:[%s349 + $0x78] sm:$0xff]
        %v376 = vld [vmem:[%s349 + $0x80] sm:$0xff]
        %v377 = vld [vmem:[%s349 + $0x88] sm:$0xff]
        %v378 = vld [vmem:[%s349 + $0x90] sm:$0xff]
        %v379 = vld [vmem:[%s349 + $0x98] sm:$0xff]
        %v380 = vld [vmem:[%s349 + $0xa0] sm:$0xff]
        %v381 = vld [vmem:[%s349 + $0xa8] sm:$0xff]
        %v382 = vld [vmem:[%s349 + $0xb0] sm:$0xff]
        %v383 = vld [vmem:[%s349 + $0xb8] sm:$0xff]
        %v384 = vld [vmem:[%s349 + $0xc0] sm:$0xff]
        %v385 = vld [vmem:[%s349 + $0xc8] sm:$0xff]
        %v386 = vld [vmem:[%s349 + $0xd0] sm:$0xff]
        %v387 = vld [vmem:[%s349 + $0xd8] sm:$0xff]
        %v388 = vld [vmem:[%s349 + $0xe0] sm:$0xff]
        %v389 = vld [vmem:[%s349 + $0xe8] sm:$0xff]
        %v390 = vld [vmem:[%s349 + $0xf0] sm:$0xff]
        %v391 = vld [vmem:[%s349 + $0xf8] sm:$0xff]
        %v392 = vld [vmem:[%s1] sm:$0xff]
        %v393 = vld [vmem:[%s1 + $0x8] sm:$0xff]
        %v394 = vld [vmem:[%s2] sm:$0xff]
        %v395 = vld [vmem:[%s2 + $0x8] sm:$0xff]
        %397 = vset.pattern.permute.xlu0 0
        %398 = vperm.xlu0 %397, %v394
        %v399 = vpop.permute.xlu0 %398
        %402 = vset.pattern.permute.xlu0 0
        %403 = vperm.xlu0 %402, %v395
        %v404 = vpop.permute.xlu0 %403
        %vm406 = vcmask 261120
        %v408 = vsel %vm406, %v392, 0
        %v411 = vsel %vm406, %v393, 0
        %v414 = vsel %vm406, %v360, 0
        %v417 = vsel %vm406, %v361, 0
        %v420 = vsel %vm406, %v362, 0
        %v423 = vsel %vm406, %v363, 0
        %v426 = vsel %vm406, %v364, 0
        %v429 = vsel %vm406, %v365, 0
        %v432 = vsel %vm406, %v366, 0
        %v435 = vsel %vm406, %v367, 0
        %v438 = vsel %vm406, %v368, 0
        %v441 = vsel %vm406, %v369, 0
        %v444 = vsel %vm406, %v370, 0
        %v447 = vsel %vm406, %v371, 0
        %v450 = vsel %vm406, %v372, 0
        %v453 = vsel %vm406, %v373, 0
        %v456 = vsel %vm406, %v374, 0
        %v459 = vsel %vm406, %v375, 0
        %v462 = vsel %vm406, %v376, 0
        %v465 = vsel %vm406, %v377, 0
        %v468 = vsel %vm406, %v378, 0
        %v471 = vsel %vm406, %v379, 0
        %v474 = vsel %vm406, %v380, 0
        %v477 = vsel %vm406, %v381, 0
        %v480 = vsel %vm406, %v382, 0
        %v483 = vsel %vm406, %v383, 0
        %v486 = vsel %vm406, %v384, 0
        %v489 = vsel %vm406, %v385, 0
        %v492 = vsel %vm406, %v386, 0
        %v495 = vsel %vm406, %v387, 0
        %v498 = vsel %vm406, %v388, 0
        %v501 = vsel %vm406, %v389, 0
        %v504 = vsel %vm406, %v390, 0
        %v507 = vsel %vm406, %v391, 0
        %509 = vmatprep.subr.mxu0 0.0
        %510 = vmatpush1.xpose.msra.mxu0 %v414
        %511 = vmatprep.subr.mxu0 0.0
        %512 = vmatpush1.xpose.msra.mxu0 %v417
        %513 = vmatprep.subr.mxu0 0.0
        %514 = vmatpush1.xpose.msra.mxu0 %v420
        %515 = vmatprep.subr.mxu0 0.0
        %516 = vmatpush1.xpose.msra.mxu0 %v423
        %517 = vmatprep.subr.mxu0 0.0
        %518 = vmatpush1.xpose.msra.mxu0 %v426
        %519 = vmatprep.subr.mxu0 0.0
        %520 = vmatpush1.xpose.msra.mxu0 %v429
        %521 = vmatprep.subr.mxu0 0.0
        %522 = vmatpush1.xpose.msra.mxu0 %v432
        %523 = vmatprep.subr.mxu0 0.0
        %524 = vmatpush1.xpose.msra.mxu0 %v435
        %525 = vmatprep.subr.mxu0 0.0
        %526 = vmatpush1.xpose.msra.mxu0 %v438
        %527 = vmatprep.subr.mxu0 0.0
        %528 = vmatpush1.xpose.msra.mxu0 %v441
        %529 = vmatprep.subr.mxu0 0.0
        %530 = vmatpush1.xpose.msra.mxu0 %v444
        %531 = vmatprep.subr.mxu0 0.0
        %532 = vmatpush1.xpose.msra.mxu0 %v447
        %533 = vmatprep.subr.mxu0 0.0
        %534 = vmatpush1.xpose.msra.mxu0 %v450
        %535 = vmatprep.subr.mxu0 0.0
        %536 = vmatpush1.xpose.msra.mxu0 %v453
        %537 = vmatprep.subr.mxu0 0.0
        %538 = vmatpush1.xpose.msra.mxu0 %v456
        %539 = vmatprep.subr.mxu0 0.0
        %540 = vmatpush1.xpose.msra.mxu0 %v459
        %541 = vmatprep.subr.mxu0 0.0
        %542 = vmatpush1.xpose.msra.mxu0 %v462
        %543 = vmatprep.subr.mxu0 0.0
        %544 = vmatpush1.xpose.msra.mxu0 %v465
        %545 = vmatprep.subr.mxu0 0.0
        %546 = vmatpush1.xpose.msra.mxu0 %v468
        %547 = vmatprep.subr.mxu0 0.0
        %548 = vmatpush1.xpose.msra.mxu0 %v471
        %549 = vmatprep.subr.mxu0 0.0
        %550 = vmatpush1.xpose.msra.mxu0 %v474
        %551 = vmatprep.subr.mxu0 0.0
        %552 = vmatpush1.xpose.msra.mxu0 %v477
        %553 = vmatprep.subr.mxu0 0.0
        %554 = vmatpush1.xpose.msra.mxu0 %v480
        %555 = vmatprep.subr.mxu0 0.0
        %556 = vmatpush1.xpose.msra.mxu0 %v483
        %557 = vmatprep.subr.mxu0 0.0
        %558 = vmatpush1.xpose.msra.mxu0 %v486
        %559 = vmatprep.subr.mxu0 0.0
        %560 = vmatpush1.xpose.msra.mxu0 %v489
        %561 = vmatprep.subr.mxu0 0.0
        %562 = vmatpush1.xpose.msra.mxu0 %v492
        %563 = vmatprep.subr.mxu0 0.0
        %564 = vmatpush1.xpose.msra.mxu0 %v495
        %565 = vmatprep.subr.mxu0 0.0
        %566 = vmatpush1.xpose.msra.mxu0 %v498
        %567 = vmatprep.subr.mxu0 0.0
        %568 = vmatpush1.xpose.msra.mxu0 %v501
        %569 = vmatprep.subr.mxu0 0.0
        %570 = vmatpush1.xpose.msra.mxu0 %v504
        %571 = vmatprep.subr.mxu0 0.0
        %572 = vmatpush1.xpose.msra.mxu0 %v507
        %573 = vmatprep.mubr.f32.mxu0 0.0
        %574 = vmatmul.mubr.f32.gmra.mrb[0].mxu0 %v408
        %v575 = vpop.f32.mrb[0].mxu0
        %v576 = vadd.f32 %v399, %v575
        %v577 = vpop.f32.mrb[0].mxu0
        %v578 = vadd.f32 %v399, %v577
        %579 = vmatprep.mubr.f32.mxu0 0.0
        %580 = vmatmul.mubr.f32.gmra.mrb[0].mxu0 %v411
        %v581 = vpop.f32.mrb[0].mxu0
        %v582 = vadd.f32 %v404, %v581
        %v583 = vpop.f32.mrb[0].mxu0
        %v584 = vadd.f32 %v404, %v583
        %585 = vdwg.mxu0
        %v586 = vmax.f32 %v576, 0.0
        %v587 = vmax.f32 %v578, 0.0
        %v588 = vmax.f32 %v582, 0.0
        %v589 = vmax.f32 %v584, 0.0
        %v590 = vld [vmem:[%s3] sm:$0xff]
        %v591 = vld [vmem:[%s4] sm:$0xff]
        %593 = vset.pattern.permute.xlu0 0
        %594 = vperm.xlu0 %593, %v591
        %v595 = vpop.permute.xlu0 %594
        %vm597 = vcmask 130048
        %v599 = vsel %vm597, %v590, 0
        %601 = vmatprep.subr.mxu0 %v587
        %602 = vmatpush1.msra.mxu0 %v586
        %603 = vmatprep.subr.mxu0 %v589
        %604 = vmatpush1.msra.mxu0 %v588
        %605 = vmatprep.subr.mxu0 0.0
        %606 = vmatpush1.msra.mxu0 0.0
        %607 = vmatprep.subr.mxu0 0.0
        %608 = vmatpush1.msra.mxu0 0.0
        %609 = vmatprep.subr.mxu0 0.0
        %610 = vmatpush1.msra.mxu0 0.0
        %611 = vmatprep.subr.mxu0 0.0
        %612 = vmatpush1.msra.mxu0 0.0
        %613 = vmatprep.subr.mxu0 0.0
        %614 = vmatpush1.msra.mxu0 0.0
        %615 = vmatprep.subr.mxu0 0.0
        %616 = vmatpush1.msra.mxu0 0.0
        %617 = vmatprep.subr.mxu0 0.0
        %618 = vmatpush1.msra.mxu0 0.0
        %619 = vmatprep.subr.mxu0 0.0
        %620 = vmatpush1.msra.mxu0 0.0
        %621 = vmatprep.subr.mxu0 0.0
        %622 = vmatpush1.msra.mxu0 0.0
        %623 = vmatprep.subr.mxu0 0.0
        %624 = vmatpush1.msra.mxu0 0.0
        %625 = vmatprep.subr.mxu0 0.0
        %626 = vmatpush1.msra.mxu0 0.0
        %627 = vmatprep.subr.mxu0 0.0
        %628 = vmatpush1.msra.mxu0 0.0
        %629 = vmatprep.subr.mxu0 0.0
        %630 = vmatpush1.msra.mxu0 0.0
        %631 = vmatprep.subr.mxu0 0.0
        %632 = vmatpush1.msra.mxu0 0.0
        %633 = vmatprep.subr.mxu0 0.0
        %634 = vmatpush1.msra.mxu0 0.0
        %635 = vmatprep.subr.mxu0 0.0
        %636 = vmatpush1.msra.mxu0 0.0
        %637 = vmatprep.subr.mxu0 0.0
        %638 = vmatpush1.msra.mxu0 0.0
        %639 = vmatprep.subr.mxu0 0.0
        %640 = vmatpush1.msra.mxu0 0.0
        %641 = vmatprep.subr.mxu0 0.0
        %642 = vmatpush1.msra.mxu0 0.0
        %643 = vmatprep.subr.mxu0 0.0
        %644 = vmatpush1.msra.mxu0 0.0
        %645 = vmatprep.subr.mxu0 0.0
        %646 = vmatpush1.msra.mxu0 0.0
        %647 = vmatprep.subr.mxu0 0.0
        %648 = vmatpush1.msra.mxu0 0.0
        %649 = vmatprep.subr.mxu0 0.0
        %650 = vmatpush1.msra.mxu0 0.0
        %651 = vmatprep.subr.mxu0 0.0
        %652 = vmatpush1.msra.mxu0 0.0
        %653 = vmatprep.subr.mxu0 0.0
        %654 = vmatpush1.msra.mxu0 0.0
        %655 = vmatprep.subr.mxu0 0.0
        %656 = vmatpush1.msra.mxu0 0.0
        %657 = vmatprep.subr.mxu0 0.0
        %658 = vmatpush1.msra.mxu0 0.0
        %659 = vmatprep.subr.mxu0 0.0
        %660 = vmatpush1.msra.mxu0 0.0
        %661 = vmatprep.subr.mxu0 0.0
        %662 = vmatpush1.msra.mxu0 0.0
        %663 = vmatprep.subr.mxu0 0.0
        %664 = vmatpush1.msra.mxu0 0.0
        %665 = vmatprep.mubr.f32.mxu0 0.0
        %666 = vmatmul.mubr.f32.gmra.mrb[0].mxu0 %v599
        %v667 = vpop.f32.mrb[0].mxu0
        %v668 = vadd.f32 %v595, %v667
        %v669 = vpop.f32.mrb[0].mxu0
        %v670 = vadd.f32 %v595, %v669
        %671 = vdwg.mxu0
        %v672 = vmax.f32 %v668, 0.0
        %v673 = vmax.f32 %v670, 0.0
        %v674 = vld [vmem:[%s5] sm:$0xff]
        %v675 = vld [vmem:[%s6] sm:$0xff]
        %677 = vset.pattern.permute.xlu0 0
        %678 = vperm.xlu0 %677, %v675
        %v679 = vpop.permute.xlu0 %678
        %vm681 = vcmask 64512
        %v683 = vsel %vm681, %v674, 0
        %685 = vmatprep.subr.mxu0 %v673
        %686 = vmatpush1.msra.mxu0 %v672
        %687 = vmatprep.subr.mxu0 0.0
        %688 = vmatpush1.msra.mxu0 0.0
        %689 = vmatprep.subr.mxu0 0.0
        %690 = vmatpush1.msra.mxu0 0.0
        %691 = vmatprep.subr.mxu0 0.0
        %692 = vmatpush1.msra.mxu0 0.0
        %693 = vmatprep.subr.mxu0 0.0
        %694 = vmatpush1.msra.mxu0 0.0
        %695 = vmatprep.subr.mxu0 0.0
        %696 = vmatpush1.msra.mxu0 0.0
        %697 = vmatprep.subr.mxu0 0.0
        %698 = vmatpush1.msra.mxu0 0.0
        %699 = vmatprep.subr.mxu0 0.0
        %700 = vmatpush1.msra.mxu0 0.0
        %701 = vmatprep.subr.mxu0 0.0
        %702 = vmatpush1.msra.mxu0 0.0
        %703 = vmatprep.subr.mxu0 0.0
        %704 = vmatpush1.msra.mxu0 0.0
        %705 = vmatprep.subr.mxu0 0.0
        %706 = vmatpush1.msra.mxu0 0.0
        %707 = vmatprep.subr.mxu0 0.0
        %708 = vmatpush1.msra.mxu0 0.0
        %709 = vmatprep.subr.mxu0 0.0
        %710 = vmatpush1.msra.mxu0 0.0
        %711 = vmatprep.subr.mxu0 0.0
        %712 = vmatpush1.msra.mxu0 0.0
        %713 = vmatprep.subr.mxu0 0.0
        %714 = vmatpush1.msra.mxu0 0.0
        %715 = vmatprep.subr.mxu0 0.0
        %716 = vmatpush1.msra.mxu0 0.0
        %717 = vmatprep.subr.mxu0 0.0
        %718 = vmatpush1.msra.mxu0 0.0
        %719 = vmatprep.subr.mxu0 0.0
        %720 = vmatpush1.msra.mxu0 0.0
        %721 = vmatprep.subr.mxu0 0.0
        %722 = vmatpush1.msra.mxu0 0.0
        %723 = vmatprep.subr.mxu0 0.0
        %724 = vmatpush1.msra.mxu0 0.0
        %725 = vmatprep.subr.mxu0 0.0
        %726 = vmatpush1.msra.mxu0 0.0
        %727 = vmatprep.subr.mxu0 0.0
        %728 = vmatpush1.msra.mxu0 0.0
        %729 = vmatprep.subr.mxu0 0.0
        %730 = vmatpush1.msra.mxu0 0.0
        %731 = vmatprep.subr.mxu0 0.0
        %732 = vmatpush1.msra.mxu0 0.0
        %733 = vmatprep.subr.mxu0 0.0
        %734 = vmatpush1.msra.mxu0 0.0
        %735 = vmatprep.subr.mxu0 0.0
        %736 = vmatpush1.msra.mxu0 0.0
        %737 = vmatprep.subr.mxu0 0.0
        %738 = vmatpush1.msra.mxu0 0.0
        %739 = vmatprep.subr.mxu0 0.0
        %740 = vmatpush1.msra.mxu0 0.0
        %741 = vmatprep.subr.mxu0 0.0
        %742 = vmatpush1.msra.mxu0 0.0
        %743 = vmatprep.subr.mxu0 0.0
        %744 = vmatpush1.msra.mxu0 0.0
        %745 = vmatprep.subr.mxu0 0.0
        %746 = vmatpush1.msra.mxu0 0.0
        %747 = vmatprep.subr.mxu0 0.0
        %748 = vmatpush1.msra.mxu0 0.0
        %749 = vmatprep.mubr.f32.mxu0 0.0
        %750 = vmatmul.mubr.f32.gmra.mrb[0].mxu0 %v683
        %v751 = vpop.f32.mrb[0].mxu0
        %v752 = vadd.f32 %v679, %v751
        %v753 = vpop.f32.mrb[0].mxu0
        %v754 = vadd.f32 %v679, %v753
        %755 = vdwg.mxu0
        %v756 = vmax.f32 %v752, 0.0
        %v757 = vmax.f32 %v754, 0.0
        %v758 = vld [vmem:[%s7] sm:$0x1]
        %v759 = vlaneseq
        %v760 = vshrl.u32 %v759, 7
        %v761 = vsub.s32 0, %v760
        %v762 = vrot.slane %v758, %v761
        %764 = vbcast.lane.b32.xlu0 %v762, 256
        %v765 = vpop.permute.xlu0 %764
        %v766 = vmul.f32 %v756, %v765
        %v767 = vmul.f32 %v757, %v765
        %v768 = vrot.slane %v766, 4
        %v769 = vadd.f32 %v766, %v768
        %v770 = vrot.slane %v769, 2
        %v771 = vadd.f32 %v769, %v770
        %v772 = vrot.slane %v771, 1
        %v773 = vadd.f32 %v771, %v772
        %v774 = vrot.slane %v767, 4
        %v775 = vadd.f32 %v767, %v774
        %v776 = vrot.slane %v775, 2
        %v777 = vadd.f32 %v775, %v776
        %v778 = vrot.slane %v777, 1
        %v779 = vadd.f32 %v777, %v778
        %v780 = vld [vmem:[#allocation2] sm:$0x1]
        %782 = vset.pattern.permute.xlu0 0
        %783 = vperm.xlu0 %782, %v780
        %v784 = vpop.permute.xlu0 %783
        %v786 = vlaneseq
        %v787 = vshrl.u32 %v786, 7
        %v788 = vsub.s32 0, %v787
        %v789 = vrot.slane %v784, %v788
        %v790 = vadd.f32 %v773, %v789
        %v791 = vadd.f32 %v779, %v789
        %v792 = vxor.u32 %v790, 2147483648
        %v793 = vxor.u32 %v791, 2147483648
        %v794 = vmul.f32 %v792, 1.442695
        %v795 = vpow.pop %v794
        %v796 = vmul.f32 %v793, 1.442695
        %v797 = vpow.pop %v796
        %v798 = vadd.f32 %v795, 1.0
        %v799 = vadd.f32 %v797, 1.0
        %v800 = vrcp.pop %v798
        %v801 = vmul.f32 1.0, %v800
        %v802 = vrcp.pop %v799
        %v803 = vmul.f32 1.0, %v802
        %v806 = vcombine.low %v801, %v803
        %v808 = vunpack.c.l.s4 1966171168
        %v809 = vunpack.c.0.s8 %v808
        %v810 = vlaneseq
        %v811 = vshrl.u32 %v810, 7
        %v812 = vsub.s32 %v809, %v811
        %v813 = vrot.slane %v806, %v812
        %v815 = vunpack.c.l.s4 1966171168
        %v816 = vunpack.c.0.s8 %v815
        %v817 = vlaneseq
        %v818 = vshrl.u32 %v817, 7
        %v819 = vsub.s32 %v816, %v818
        %v820 = vrot.slane %v813, %v819
        %v822 = vlaneseq
        %vm823 = vcmp.ge.s32.totalorder %v822, 0
        %vm824 = vcmp.lt.s32.totalorder %v822, 256
        %vm825 = vmand %vm823, %vm824
        %826 = vst.msk [vmem:[%s340] sm:$0x3] %vm825, %v820
        %s827 = sand.u32 %s227, 1
        %s828 = scalar_lea.sflag [#allocation4], %s827
        %s829 = sand.u32 %s227, 1
        %s830 = smul.addr %s829, 2
        %s831 = scalar_lea.vmem [#allocation3], %s830
        // Predicated region
        $region57: #{tpu_custom_call.1} parent=55 // pred_check
          %p832 = pneg %p237
        $region58: #{tpu_custom_call.1} parent=55 // pred_check_branch
          %834 = sbr.rel (%p832) target = $region60
        $region59: #{tpu_custom_call.1} parent=55 // pred_region
          %s835 = smul.u32 2, %s25
          %s836 = ssub.s32 3, %s835
          %p837 = scmp.lt.s32.totalorder %s836, 2
          %s838 = scalar_select %p837, %s836, 2
          %s839 = smul.u32 16, %s838
          %s841 = ssub.s32 32, %s839
          %842 = vsyncadd %s828, %s841
          %p843 = scmp.ne.s32.totalorder 0, %s839
          %s844 = smul.addr %s835, 16
          %s845 = scalar_lea.hbm %s9, %s844
          %s846 = sshll.u32 %s838, 4
          %s847 = sshll.u32 %s831, 4
          %s848 = int_to_ptr.vmem [resolvable:$true] %s847
          %850 = dma.vmem_to_hbm [thread:$0]  (%p843), %s848, %s846, %s845, %s828
        $region60: #{tpu_custom_call.1} parent=55 // pred_fallthru
          _
      $region56: #{tpu_custom_call.1} parent=5 // pred_fallthru
        _
      %p851 = scmp.le.s32.totalorder 2, %s20
      // Predicated region
      $region61: #{tpu_custom_call.1} parent=5 // pred_check
        %p852 = pneg %p851
      $region62: #{tpu_custom_call.1} parent=5 // pred_check_branch
        %854 = sbr.rel (%p852) target = $region64
      $region63: #{tpu_custom_call.1} parent=5 // pred_region
        %s855 = ssub.s32 %s20, 2
        // Predicated region
        $region65: #{tpu_custom_call.1} parent=63 // pred_check
          %p856 = pneg %p243
        $region66: #{tpu_custom_call.1} parent=63 // pred_check_branch
          %858 = sbr.rel (%p856) target = $region68
        $region67: #{tpu_custom_call.1} parent=63 // pred_region
          %s859 = sand.u32 %s228, 1
          %s860 = scalar_lea.sflag [#allocation4], %s859
          %s861 = sand.u32 %s228, 1
          %s862 = smul.addr %s861, 2
          %s863 = scalar_lea.vmem [#allocation3], %s862
          %864 = dma.done %s860, 32
        $region68: #{tpu_custom_call.1} parent=63 // pred_fallthru
          _
      $region64: #{tpu_custom_call.1} parent=5 // pred_fallthru
        _
    $region6: #{tpu_custom_call.1} parent=1 // loop_footer
      %s24 = sadd.s32 1, %s20
    $region7: #{tpu_custom_call.1} parent=1 // loop_footer_branch
      %19 = sbr.rel target = $region3
    $region8: #{tpu_custom_call.1} parent=1 // loop_exit
      _
    %865 = vsyncpa [#allocation4], 1
    %s866 = scalar_lea.sflag [#allocation4], 1
    %867 = vsyncpa %s866, 1

</llo_original>
